<compile_context>
chip_gen: v6e
topology: v6e:2x2x1
jax: 0.10.0
libtpu: 0.0.40
codegen_flags: <defaults>
</compile_context>

<pallas_src>
import jax
import jax.numpy as jnp
from jax.experimental import pallas as pl
from jax.experimental.pallas import tpu as pltpu


def _sigmoid(z):
    # One EUP transcendental per element (tanh) instead of exp + divide.
    return 0.5 * (jnp.tanh(0.5 * z) + 1.0)


def mlp_kernel(x_ref, w2_ref, c_ref, o_ref):
    # Transposed layout: batch on the lane (last) axis.
    #   x_ref : (1, tb)
    #   w2_ref: (hp, hp)   (out x in, zero-padded)
    #   c_ref : (hp, 8)    col0=w1, col1=b1, col2=b2, col3=w3, c[0,4]=b3
    #   o_ref : (1, tb)
    x = x_ref[...]                                                    # (1, tb)
    w1 = c_ref[:, 0:1]                                                # (hp, 1)
    b1 = c_ref[:, 1:2]
    b2 = c_ref[:, 2:3]
    w3 = c_ref[:, 3:4]
    b3 = c_ref[0:1, 4:5]                                              # (1, 1)

    # Layer 1: K=1 "matmul" == outer product -> VPU broadcast multiply.
    h1 = _sigmoid(w1 * x + b1)                                        # (hp, tb)

    # Layer 2: dense (hp,hp) x (hp,tb) contraction -> MXU, f32 accumulation.
    h2 = jnp.dot(w2_ref[...], h1, preferred_element_type=jnp.float32)
    h2 = _sigmoid(h2 + b2)                                            # (hp, tb)

    # Layer 3: N=1 "matmul" == length-hp contraction -> VPU mul + sublane reduce.
    y = jnp.sum(h2 * w3, axis=0, keepdims=True) + b3                  # (1, tb)
    o_ref[...] = _sigmoid(y).astype(o_ref.dtype)


def prepare_params(params):
    """Pad/transpose weights ONCE; reuse the result across forward calls."""
    w1, b1, w2, b2, w3, b3 = (params[k] for k in
                              ("w1", "b1", "w2", "b2", "w3", "b3"))
    h = w1.shape[1]
    hp = max(8, ((h + 7) // 8) * 8)          # pad hidden dim to f32 sublane multiple
    ph = hp - h

    # Zero padding keeps the math exact: padded h1 rows are killed by zero W2
    # columns; padded h2 rows (= sigmoid(0) = 0.5) are killed by zero W3 rows.
    w2t = jnp.pad(w2.T, ((0, ph), (0, ph))).astype(jnp.float32)       # (hp, hp)

    consts = jnp.zeros((hp, 8), jnp.float32)
    consts = consts.at[:h, 0].set(w1[0].astype(jnp.float32))          # w1
    consts = consts.at[:h, 1].set(b1[0].astype(jnp.float32))          # b1
    consts = consts.at[:h, 2].set(b2[0].astype(jnp.float32))          # b2
    consts = consts.at[:h, 3].set(w3[:, 0].astype(jnp.float32))       # w3
    consts = consts.at[0, 4].set(b3[0, 0].astype(jnp.float32))        # b3
    return {"w2t": w2t, "consts": consts}


def updater_apply(x, prepared, *, batch_tile=1024):
    """x: (B, 1) float32. prepared: output of prepare_params."""
    assert batch_tile % 128 == 0
    w2t, consts = prepared["w2t"], prepared["consts"]
    hp = w2t.shape[0]
    B = x.shape[0]

    # Lane-dense tiling: round batch up to 128 lanes; shrink the tile for small
    # B so we never run grid steps of pure padding. No forced min_grid=2.
    B128 = ((B + 127) // 128) * 128
    tile = min(batch_tile, B128)             # multiple of 128 by construction
    num_tiles = -(-B128 // tile)
    B_pad = num_tiles * tile

    xt = jnp.pad(x.reshape(1, B), ((0, 0), (0, B_pad - B)))           # (1, B_pad)

    cost = pl.CostEstimate(
        flops=2 * B_pad * hp * (hp + 2),
        transcendentals=B_pad * (2 * hp + 1),
        bytes_accessed=4 * (2 * B_pad + hp * hp + hp * 8),
    )

    out_t = pl.pallas_call(
        mlp_kernel,
        out_shape=jax.ShapeDtypeStruct((1, B_pad), x.dtype),
        grid=(num_tiles,),
        in_specs=[
            pl.BlockSpec((1, tile), lambda i: (0, i)),                # x (lane-dense)
            pl.BlockSpec((hp, hp), lambda i: (0, 0)),                 # W2^T, resident
            pl.BlockSpec((hp, 8), lambda i: (0, 0)),                  # packed consts
        ],
        out_specs=pl.BlockSpec((1, tile), lambda i: (0, i)),          # lane-dense out
        compiler_params=pltpu.CompilerParams(
            dimension_semantics=("parallel",)),
        cost_estimate=cost,
    )(xt, w2t, consts)

    return out_t[:, :B].reshape(B, 1)


def updater_forward(x, params, *, batch_tile=1024):
    return updater_apply(x, prepare_params(params), batch_tile=batch_tile)


def init_params(key, h=10):
    ks = jax.random.split(key, 6)
    # Deterministic synthetic init (uniform, roughly like PyTorch's default scale).
    def u(k, shape, fan_in):
        bound = 1.0 / jnp.sqrt(fan_in)
        return jax.random.uniform(k, shape, jnp.float32, -bound, bound)
    return {
        "w1": u(ks[0], (1, h), 1.0),
        "b1": u(ks[1], (1, h), 1.0),
        "w2": u(ks[2], (h, h), float(h)),
        "b2": u(ks[3], (1, h), float(h)),
        "w3": u(ks[4], (h, 1), float(h)),
        "b3": u(ks[5], (1, 1), float(h)),
    }


if __name__ == "__main__":
    key = jax.random.PRNGKey(0)
    k_x, k_p = jax.random.split(key)

    B, H = 16, 10
    x = jax.random.normal(k_x, (B, 1), jnp.float32)
    params = init_params(k_p, h=H)

    # Prepare padded/transposed weights once, reuse for the call.
    prepared = prepare_params(params)
    out = jax.block_until_ready(updater_apply(x, prepared))

    # Reference check in plain JAX (same math as the PyTorch module).
    def ref(x, p):
        a = jax.nn.sigmoid(x @ p["w1"] + p["b1"])
        a = jax.nn.sigmoid(a @ p["w2"] + p["b2"])
        return jax.nn.sigmoid(a @ p["w3"] + p["b3"])

    expected = ref(x, params)
    assert out.shape == (B, 1)
    assert jnp.allclose(out, expected, atol=1e-5, rtol=1e-5)

    print("KERNEL_OK")
</pallas_src>

<mosaic_0001>
module attributes {stable_mosaic.version = 11 : i64} {
  func.func @mlp_kernel(%arg0: i32, %arg1: memref<1x128xf32, #tpu.memory_space<vmem>>, %arg2: memref<16x16xf32, #tpu.memory_space<vmem>>, %arg3: memref<16x8xf32, #tpu.memory_space<vmem>>, %arg4: memref<1x128xf32, #tpu.memory_space<vmem>>) attributes {dimension_semantics = [#tpu.dimension_semantics<parallel>], iteration_bounds = array<i64: 1>, scalar_prefetch = 0 : i64, scratch_operands = 0 : i64, tpu.core_type = #tpu.core_type<tc>, window_params = [{transform_indices = @transform_0, window_bounds = array<i64: 1, 128>}, {pipeline_mode = #tpu.pipeline_mode<synchronous>, transform_indices = @transform_1, window_bounds = array<i64: 16, 16>}, {pipeline_mode = #tpu.pipeline_mode<synchronous>, transform_indices = @transform_2, window_bounds = array<i64: 16, 8>}, {transform_indices = @transform_3, window_bounds = array<i64: 1, 128>}]} {
    %c0 = arith.constant 0 : index
    %c0_0 = arith.constant 0 : index
    %0 = vector.load %arg1[%c0, %c0_0] : memref<1x128xf32, #tpu.memory_space<vmem>>, vector<1x128xf32>
    %c0_1 = arith.constant 0 : index
    %c0_2 = arith.constant 0 : index
    %1 = vector.load %arg3[%c0_1, %c0_2] : memref<16x8xf32, #tpu.memory_space<vmem>>, vector<16x1xf32>
    %c0_3 = arith.constant 0 : index
    %c1 = arith.constant 1 : index
    %2 = vector.load %arg3[%c0_3, %c1] : memref<16x8xf32, #tpu.memory_space<vmem>>, vector<16x1xf32>
    %c0_4 = arith.constant 0 : index
    %c2 = arith.constant 2 : index
    %3 = vector.load %arg3[%c0_4, %c2] : memref<16x8xf32, #tpu.memory_space<vmem>>, vector<16x1xf32>
    %c0_5 = arith.constant 0 : index
    %c3 = arith.constant 3 : index
    %4 = vector.load %arg3[%c0_5, %c3] : memref<16x8xf32, #tpu.memory_space<vmem>>, vector<16x1xf32>
    %c0_6 = arith.constant 0 : index
    %c4 = arith.constant 4 : index
    %5 = vector.load %arg3[%c0_6, %c4] : memref<16x8xf32, #tpu.memory_space<vmem>>, vector<1x1xf32>
    %6 = vector.broadcast %1 : vector<16x1xf32> to vector<16x128xf32>
    %7 = vector.broadcast %0 : vector<1x128xf32> to vector<16x128xf32>
    %8 = arith.mulf %6, %7 : vector<16x128xf32>
    %9 = vector.broadcast %2 : vector<16x1xf32> to vector<16x128xf32>
    %10 = arith.addf %8, %9 : vector<16x128xf32>
    %cst = arith.constant 5.000000e-01 : f32
    %11 = vector.broadcast %cst : f32 to vector<16x128xf32>
    %12 = arith.mulf %11, %10 : vector<16x128xf32>
    %13 = math.tanh %12 : vector<16x128xf32>
    %cst_7 = arith.constant 1.000000e+00 : f32
    %14 = vector.broadcast %cst_7 : f32 to vector<16x128xf32>
    %15 = arith.addf %13, %14 : vector<16x128xf32>
    %cst_8 = arith.constant 5.000000e-01 : f32
    %16 = vector.broadcast %cst_8 : f32 to vector<16x128xf32>
    %17 = arith.mulf %16, %15 : vector<16x128xf32>
    %c0_9 = arith.constant 0 : index
    %c0_10 = arith.constant 0 : index
    %18 = vector.load %arg2[%c0_9, %c0_10] : memref<16x16xf32, #tpu.memory_space<vmem>>, vector<16x16xf32>
    %cst_11 = arith.constant dense<0.000000e+00> : vector<16x128xf32>
    %19 = tpu.matmul %18, %17, %cst_11 {dimension_numbers = #tpu.dot_dimension_numbers<[1], [0], [0], [1], [0, 0, 1, 1], [], []>} : vector<16x16xf32>, vector<16x128xf32>, vector<16x128xf32> -> vector<16x128xf32>
    %20 = vector.broadcast %3 : vector<16x1xf32> to vector<16x128xf32>
    %21 = arith.addf %19, %20 : vector<16x128xf32>
    %cst_12 = arith.constant 5.000000e-01 : f32
    %22 = vector.broadcast %cst_12 : f32 to vector<16x128xf32>
    %23 = arith.mulf %22, %21 : vector<16x128xf32>
    %24 = math.tanh %23 : vector<16x128xf32>
    %cst_13 = arith.constant 1.000000e+00 : f32
    %25 = vector.broadcast %cst_13 : f32 to vector<16x128xf32>
    %26 = arith.addf %24, %25 : vector<16x128xf32>
    %cst_14 = arith.constant 5.000000e-01 : f32
    %27 = vector.broadcast %cst_14 : f32 to vector<16x128xf32>
    %28 = arith.mulf %27, %26 : vector<16x128xf32>
    %29 = vector.broadcast %4 : vector<16x1xf32> to vector<16x128xf32>
    %30 = arith.mulf %28, %29 : vector<16x128xf32>
    %cst_15 = arith.constant dense<0.000000e+00> : vector<128xf32>
    %31 = vector.multi_reduction <add>, %30, %cst_15 [0] : vector<16x128xf32> to vector<128xf32>
    %32 = vector.shape_cast %31 : vector<128xf32> to vector<1x128xf32>
    %33 = vector.broadcast %5 : vector<1x1xf32> to vector<1x128xf32>
    %34 = arith.addf %32, %33 : vector<1x128xf32>
    %cst_16 = arith.constant 5.000000e-01 : f32
    %35 = vector.broadcast %cst_16 : f32 to vector<1x128xf32>
    %36 = arith.mulf %35, %34 : vector<1x128xf32>
    %37 = math.tanh %36 : vector<1x128xf32>
    %cst_17 = arith.constant 1.000000e+00 : f32
    %38 = vector.broadcast %cst_17 : f32 to vector<1x128xf32>
    %39 = arith.addf %37, %38 : vector<1x128xf32>
    %cst_18 = arith.constant 5.000000e-01 : f32
    %40 = vector.broadcast %cst_18 : f32 to vector<1x128xf32>
    %41 = arith.mulf %40, %39 : vector<1x128xf32>
    %c0_19 = arith.constant 0 : index
    %c0_20 = arith.constant 0 : index
    %42 = vector.load %arg4[%c0_19, %c0_20] : memref<1x128xf32, #tpu.memory_space<vmem>>, vector<1x128xf32>
    tpu.vector_store %arg4[%c0_19, %c0_20], %41 {strides = array<i32>} : memref<1x128xf32, #tpu.memory_space<vmem>>, vector<1x128xf32>,
    return
  }
  func.func @transform_0(%arg0: i32) -> (i32, i32) {
    %c0_i32 = arith.constant 0 : i32
    %c0_i32_0 = arith.constant 0 : i32
    return %c0_i32, %arg0 : i32, i32
  }
  func.func @transform_1(%arg0: i32) -> (i32, i32) {
    %c0_i32 = arith.constant 0 : i32
    %c0_i32_0 = arith.constant 0 : i32
    %c0_i32_1 = arith.constant 0 : i32
    return %c0_i32, %c0_i32_0 : i32, i32
  }
  func.func @transform_2(%arg0: i32) -> (i32, i32) {
    %c0_i32 = arith.constant 0 : i32
    %c0_i32_0 = arith.constant 0 : i32
    %c0_i32_1 = arith.constant 0 : i32
    return %c0_i32, %c0_i32_0 : i32, i32
  }
  func.func @transform_3(%arg0: i32) -> (i32, i32) {
    %c0_i32 = arith.constant 0 : i32
    %c0_i32_0 = arith.constant 0 : i32
    return %c0_i32, %arg0 : i32, i32
  }
}

</mosaic_0001>

<llo_original>
// kernel: tpu_custom_call.1
$region0: #{tpu_custom_call.1}
  #allocation0 [shape = 'u32[]', space=smem, size = 0x4, offset = 0x4, fixed_abs, tag = 'smem constant byte address 0x4 - core index']
  #allocation1 [shape = 'u32[144,128]{1,0:T(1,128)}', space=vmem, size = 0x12000, scoped, tag = 'internal scratch']
  %s0 = inlined_call_operand.vmem [shape: f32[1,128], index: 0, kind: input, shape index: {}]
  %s1 = inlined_call_operand.vmem [shape: f32[16,16], index: 1, kind: input, shape index: {}]
  %s2 = inlined_call_operand.vmem [shape: f32[16,8], index: 2, kind: input, shape index: {}]
  %s3 = inlined_call_operand.hbm [shape: f32[1,128], index: 3, kind: output, shape index: {}]
  %s4 = sld [smem:[#allocation0]]
  $region22: #{tpu_custom_call.1} parent=0
    _
  %s6 = ssub.s32 1, %s4
  %s7 = scalar_select 0, %s6, %s4
  $region1: #{tpu_custom_call.1} parent=0
    #allocation2 [shape = 'u8[512]{0}', space=vmem, size = 0x400, scoped, tag = 'output window, operand 0, single buffered']
    #allocation3 [shape = 's32[1]{0}', space=sflag, size = 0x4, scoped, tag = 'scoped memory for tpu_custom_call.1']
    %8 = vsyncpa [#allocation3], 0
    // Predicated region
    $region2: #{tpu_custom_call.1} parent=1 // pred_check
      _
    $region3: #{tpu_custom_call.1} parent=1 // pred_check_branch
      %10 = sbr.rel (0) target = $region5
    $region4: #{tpu_custom_call.1} parent=1 // pred_region
      _
    $region5: #{tpu_custom_call.1} parent=1 // pred_fallthru
      _
    // Predicated region
    $region6: #{tpu_custom_call.1} parent=1 // pred_check
      _
    $region7: #{tpu_custom_call.1} parent=1 // pred_check_branch
      %12 = sbr.rel (0) target = $region9
    $region8: #{tpu_custom_call.1} parent=1 // pred_region
      _
    $region9: #{tpu_custom_call.1} parent=1 // pred_fallthru
      _
    // Predicated region
    $region10: #{tpu_custom_call.1} parent=1 // pred_check
      _
    $region11: #{tpu_custom_call.1} parent=1 // pred_check_branch
      %14 = sbr.rel (0) target = $region13
    $region12: #{tpu_custom_call.1} parent=1 // pred_region
      _
    $region13: #{tpu_custom_call.1} parent=1 // pred_fallthru
      _
    %v15 = vld [vmem:[%s0] sm:$0x1]
    %v16 = vld [vmem:[%s2] sm:$0xff]
    %v17 = vld [vmem:[%s2 + $0x8] sm:$0xff]
    %v18 = vld [vmem:[%s2] sm:$0x1]
    %20 = vset.pattern.permute.xlu0 0
    %21 = vperm.xlu0 %20, %v16
    %v22 = vpop.permute.xlu0 %21
    %25 = vset.pattern.permute.xlu0 0
    %26 = vperm.xlu0 %25, %v17
    %v27 = vpop.permute.xlu0 %26
    %v30 = vlaneseq
    %v31 = vshrl.u32 %v30, 7
    %v32 = vsub.s32 0, %v31
    %v33 = vrot.slane %v15, %v32
    %v35 = vmul.f32 %v22, %v33
    %v36 = vmul.f32 %v27, %v33
    %37 = vset.pattern.permute.xlu0 1
    %38 = vperm.xlu0 %37, %v16
    %v39 = vpop.permute.xlu0 %38
    %41 = vset.pattern.permute.xlu0 1
    %42 = vperm.xlu0 %41, %v17
    %v43 = vpop.permute.xlu0 %42
    %v45 = vadd.f32 %v35, %v39
    %v46 = vadd.f32 %v36, %v43
    %v47 = vmul.f32 %v45, 0.5
    %v48 = vmul.f32 %v46, 0.5
    %v49 = vtanh.pop %v47
    %v50 = vtanh.pop %v48
    %v51 = vadd.f32 %v49, 1.0
    %v52 = vadd.f32 %v50, 1.0
    %v53 = vmul.f32 %v51, 0.5
    %v54 = vmul.f32 %v52, 0.5
    %v55 = vld [vmem:[%s1] sm:$0xff]
    %v56 = vld [vmem:[%s1 + $0x8] sm:$0xff]
    %57 = vset.pattern.permute.xlu0 2
    %58 = vperm.xlu0 %57, %v16
    %v59 = vpop.permute.xlu0 %58
    %61 = vset.pattern.permute.xlu0 2
    %62 = vperm.xlu0 %61, %v17
    %v63 = vpop.permute.xlu0 %62
    %vm65 = vcmask 130048
    %v67 = vsel %vm65, %v55, 0
    %v70 = vsel %vm65, %v56, 0
    %72 = vmatprep.subr.mxu0 0.0
    %73 = vmatpush1.msra.mxu0 0.0
    %74 = vmatprep.subr.mxu0 0.0
    %75 = vmatpush1.msra.mxu0 0.0
    %76 = vmatprep.subr.mxu0 0.0
    %77 = vmatpush1.msra.mxu0 0.0
    %78 = vmatprep.subr.mxu0 0.0
    %79 = vmatpush1.msra.mxu0 0.0
    %80 = vmatprep.subr.mxu0 0.0
    %81 = vmatpush1.msra.mxu0 0.0
    %82 = vmatprep.subr.mxu0 0.0
    %83 = vmatpush1.msra.mxu0 0.0
    %84 = vmatprep.subr.mxu0 0.0
    %85 = vmatpush1.msra.mxu0 0.0
    %86 = vmatprep.subr.mxu0 0.0
    %87 = vmatpush1.msra.mxu0 0.0
    %88 = vmatprep.subr.mxu0 0.0
    %89 = vmatpush1.msra.mxu0 0.0
    %90 = vmatprep.subr.mxu0 0.0
    %91 = vmatpush1.msra.mxu0 0.0
    %92 = vmatprep.subr.mxu0 0.0
    %93 = vmatpush1.msra.mxu0 0.0
    %94 = vmatprep.subr.mxu0 0.0
    %95 = vmatpush1.msra.mxu0 0.0
    %96 = vmatprep.subr.mxu0 0.0
    %97 = vmatpush1.msra.mxu0 0.0
    %98 = vmatprep.subr.mxu0 0.0
    %99 = vmatpush1.msra.mxu0 0.0
    %100 = vmatprep.subr.mxu0 0.0
    %101 = vmatpush1.msra.mxu0 %v54
    %102 = vmatprep.subr.mxu0 0.0
    %103 = vmatpush1.msra.mxu0 %v53
    %104 = vmatprep.subr.mxu0 0.0
    %105 = vmatpush2.msra.mxu0 0.0
    %106 = vmatprep.subr.mxu0 0.0
    %107 = vmatpush2.msra.mxu0 0.0
    %108 = vmatprep.subr.mxu0 0.0
    %109 = vmatpush2.msra.mxu0 0.0
    %110 = vmatprep.subr.mxu0 0.0
    %111 = vmatpush2.msra.mxu0 0.0
    %112 = vmatprep.subr.mxu0 0.0
    %113 = vmatpush2.msra.mxu0 0.0
    %114 = vmatprep.subr.mxu0 0.0
    %115 = vmatpush2.msra.mxu0 0.0
    %116 = vmatprep.subr.mxu0 0.0
    %117 = vmatpush2.msra.mxu0 0.0
    %118 = vmatprep.subr.mxu0 0.0
    %119 = vmatpush2.msra.mxu0 0.0
    %120 = vmatprep.subr.mxu0 0.0
    %121 = vmatpush2.msra.mxu0 0.0
    %122 = vmatprep.subr.mxu0 0.0
    %123 = vmatpush2.msra.mxu0 0.0
    %124 = vmatprep.subr.mxu0 0.0
    %125 = vmatpush2.msra.mxu0 0.0
    %126 = vmatprep.subr.mxu0 0.0
    %127 = vmatpush2.msra.mxu0 0.0
    %128 = vmatprep.subr.mxu0 0.0
    %129 = vmatpush2.msra.mxu0 0.0
    %130 = vmatprep.subr.mxu0 0.0
    %131 = vmatpush2.msra.mxu0 0.0
    %132 = vmatprep.subr.mxu0 0.0
    %133 = vmatpush2.msra.mxu0 0.0
    %134 = vmatprep.subr.mxu0 0.0
    %135 = vmatpush2.msra.mxu0 0.0
    %136 = vmatprep.mubr.f32.mxu0 0.0
    %137 = vmatmul.mubr.f32.gmra.mxu0 %v67
    %v138 = vpop.f32.mrf.mxu0
    %v139 = vadd.f32 %v59, %v138
    %v140 = vpop.f32.mrf.mxu0
    %141 = vmatprep.mubr.f32.mxu0 0.0
    %142 = vmatmul.mubr.f32.gmra.mxu0 %v70
    %v143 = vpop.f32.mrf.mxu0
    %v144 = vadd.f32 %v63, %v143
    %v145 = vpop.f32.mrf.mxu0
    %146 = vdwg.mxu0
    %v147 = vmul.f32 %v139, 0.5
    %v148 = vmul.f32 %v144, 0.5
    %v149 = vtanh.pop %v147
    %v150 = vtanh.pop %v148
    %v151 = vadd.f32 %v149, 1.0
    %v152 = vadd.f32 %v150, 1.0
    %v153 = vmul.f32 %v151, 0.5
    %v154 = vmul.f32 %v152, 0.5
    %155 = vset.pattern.permute.xlu0 3
    %156 = vperm.xlu0 %155, %v16
    %v157 = vpop.permute.xlu0 %156
    %159 = vset.pattern.permute.xlu0 3
    %160 = vperm.xlu0 %159, %v17
    %v161 = vpop.permute.xlu0 %160
    %v163 = vmul.f32 %v153, %v157
    %v164 = vmul.f32 %v154, %v161
    %v165 = vadd.f32 %v163, %v164
    %v166 = vrot.slane %v165, 4
    %v167 = vadd.f32 %v165, %v166
    %v168 = vrot.slane %v167, 2
    %v169 = vadd.f32 %v167, %v168
    %v170 = vrot.slane %v169, 1
    %v171 = vadd.f32 %v169, %v170
    %173 = vset.pattern.permute.xlu0 4
    %174 = vperm.xlu0 %173, %v18
    %v175 = vpop.permute.xlu0 %174
    %v177 = vadd.f32 %v171, %v175
    %v178 = vmul.f32 %v177, 0.5
    %v179 = vtanh.pop %v178
    %v180 = vadd.f32 %v179, 1.0
    %v181 = vmul.f32 %v180, 0.5
    %182 = vst [vmem:[#allocation2] sm:$0x1] %v181
    // Predicated region
    $region14: #{tpu_custom_call.1} parent=1 // pred_check
      _
    $region15: #{tpu_custom_call.1} parent=1 // pred_check_branch
      %184 = sbr.rel (0) target = $region17
    $region16: #{tpu_custom_call.1} parent=1 // pred_region
      %s186 = ssub.s32 16, 16
      %187 = vsyncadd [#allocation3], %s186
      %s189 = sshll.u32 [#allocation2], 4
      %s190 = int_to_ptr.vmem [resolvable:$true] %s189
      %192 = dma.vmem_to_hbm [thread:$0]  %s190, 16, %s3, [#allocation3]
    $region17: #{tpu_custom_call.1} parent=1 // pred_fallthru
      _
    // Predicated region
    $region18: #{tpu_custom_call.1} parent=1 // pred_check
      _
    $region19: #{tpu_custom_call.1} parent=1 // pred_check_branch
      %194 = sbr.rel (0) target = $region21
    $region20: #{tpu_custom_call.1} parent=1 // pred_region
      %195 = dma.done [#allocation3], 16
    $region21: #{tpu_custom_call.1} parent=1 // pred_fallthru
      _
    %196 = vsyncpa [#allocation3], 1

</llo_original>
